<compile_context>
chip_gen: v7x
topology: tpu7x:2x2x1
jax: 0.10.0
libtpu: 0.0.40
codegen_flags: <defaults>
</compile_context>

<pallas_src>
import functools
import math

import jax
import jax.numpy as jnp
from jax import lax
from jax.experimental import pallas as pl
from jax.experimental.pallas import tpu as pltpu

BN_EPS = 1e-5
STAT_EPS = 1e-12


def asp_kernel(x_ref, w1x_ref, w1c_ref, b1_ref, gamma_ref, beta_ref,
               w2_ref, b2_ref, out_ref, bn_sum, bn_sumsq, *, inv_nl):
    p = pl.program_id(0)        # 0 = BatchNorm-statistics pass, 1 = apply pass
    n = pl.program_id(1)        # batch index

    x = x_ref[0].astype(jnp.float32)                          # (C, L)
    L = x.shape[1]
    inv_l = jnp.float32(1.0 / L)

    # ---- global-context stats over time (mask = 1/L), E[x^2]-E[x]^2 form ----
    mean_g = jnp.sum(x, axis=1, keepdims=True) * inv_l        # (C, 1)
    ex2_g = jnp.sum(x * x, axis=1, keepdims=True) * inv_l
    std_g = jnp.sqrt(jnp.maximum(ex2_g - mean_g * mean_g, STAT_EPS))

    # ---- TDNN 1x1 conv + ReLU (bf16 MXU, f32 accumulation) -------------------
    # The [mean, std] context contributes a per-sample constant column u that is
    # broadcast over time; fold the conv bias into it (one broadcast add).
    xw = jnp.dot(w1x_ref[...], x.astype(jnp.bfloat16),
                 preferred_element_type=jnp.float32)           # (A, L)
    ctx = jnp.concatenate([mean_g, std_g], axis=0).astype(jnp.bfloat16)  # (2C, 1)
    u = jnp.dot(w1c_ref[...], ctx, preferred_element_type=jnp.float32)   # (A, 1)
    u = u + b1_ref[...].astype(jnp.float32)
    t = jnp.maximum(xw + u, 0.0)                               # (A, L)

    @pl.when(p == 0)
    def _bn_accumulate():
        @pl.when(n == 0)
        def _init():
            bn_sum[...] = jnp.zeros_like(bn_sum)
            bn_sumsq[...] = jnp.zeros_like(bn_sumsq)
        bn_sum[...] += jnp.sum(t, axis=1, keepdims=True)
        bn_sumsq[...] += jnp.sum(t * t, axis=1, keepdims=True)

    @pl.when(p == 1)
    def _apply():
        # BatchNorm1d training-mode forward: exact batch stats, biased variance.
        bn_mean = bn_sum[...] * inv_nl                         # (A, 1)
        bn_var = bn_sumsq[...] * inv_nl - bn_mean * bn_mean
        scale = gamma_ref[...].astype(jnp.float32) * lax.rsqrt(bn_var + BN_EPS)
        shift = beta_ref[...].astype(jnp.float32) - bn_mean * scale
        th = jnp.tanh(t * scale + shift)                       # (A, L)

        # 1x1 conv back to C channels (bf16 MXU, f32 accumulation).
        s = jnp.dot(w2_ref[...], th.astype(jnp.bfloat16),
                    preferred_element_type=jnp.float32)        # (C, L)
        s = s + b2_ref[...].astype(jnp.float32)

        # softmax over time (lane axis); EUP approx reciprocal for the denom.
        # TODO(synk): for very long L, stream this pass over L tiles with an
        # online (flash-style) softmax to cap VMEM at O(C * L_tile).
        s = jnp.exp(s - jnp.max(s, axis=1, keepdims=True))
        attn = s * pl.reciprocal(jnp.sum(s, axis=1, keepdims=True), approx=True)

        # attentive statistics (sum(attn)==1 => E[x^2]-E[x]^2 form is valid).
        mean = jnp.sum(attn * x, axis=1, keepdims=True)        # (C, 1)
        ex2 = jnp.sum(attn * (x * x), axis=1, keepdims=True)
        std = jnp.sqrt(jnp.maximum(ex2 - mean * mean, STAT_EPS))

        out_ref[0] = jnp.concatenate([mean, std], axis=0).astype(out_ref.dtype)


def attentive_statistics_pooling(x_ncl, params):
    """x_ncl: (N, C, L) float (PyTorch Conv1d layout). Returns (N, 2C, 1)."""
    w1, b1, gamma, beta, w2, b2 = params
    N, C, L = x_ncl.shape
    A = w1.shape[0]

    x = jnp.asarray(x_ncl, jnp.float32)                        # no layout change

    # Weights used in their native (out, in) layout: slice only, never transpose.
    w1x = jnp.asarray(w1[:, :C], jnp.bfloat16)                 # (A, C)   x part
    w1c = jnp.asarray(w1[:, C:], jnp.bfloat16)                 # (A, 2C)  [mean, std] part
    w2b = jnp.asarray(w2, jnp.bfloat16)                        # (C, A)
    b1_c = jnp.asarray(b1, jnp.float32).reshape(A, 1)
    gamma_c = jnp.asarray(gamma, jnp.float32).reshape(A, 1)
    beta_c = jnp.asarray(beta, jnp.float32).reshape(A, 1)
    b2_c = jnp.asarray(b2, jnp.float32).reshape(C, 1)

    kernel = functools.partial(asp_kernel, inv_nl=float(1.0 / (N * L)))

    out = pl.pallas_call(
        kernel,
        out_shape=jax.ShapeDtypeStruct((N, 2 * C, 1), jnp.float32),
        grid_spec=pltpu.PrefetchScalarGridSpec(
            num_scalar_prefetch=0,
            grid=(2, N),                                       # (pass, batch)
            in_specs=[
                pl.BlockSpec((1, C, L), lambda p, n: (n, 0, 0)),   # x (per sample)
                pl.BlockSpec((A, C), lambda p, n: (0, 0)),         # w1x
                pl.BlockSpec((A, 2 * C), lambda p, n: (0, 0)),     # w1c
                pl.BlockSpec((A, 1), lambda p, n: (0, 0)),         # b1
                pl.BlockSpec((A, 1), lambda p, n: (0, 0)),         # gamma
                pl.BlockSpec((A, 1), lambda p, n: (0, 0)),         # beta
                pl.BlockSpec((C, A), lambda p, n: (0, 0)),         # w2
                pl.BlockSpec((C, 1), lambda p, n: (0, 0)),         # b2
            ],
            out_specs=pl.BlockSpec((1, 2 * C, 1), lambda p, n: (n, 0, 0)),
            scratch_shapes=[pltpu.VMEM((A, 1), jnp.float32),       # BN sum
                            pltpu.VMEM((A, 1), jnp.float32)],      # BN sum of squares
        ),
        compiler_params=pltpu.CompilerParams(
            # TODO(synk): batch axis could be "parallel" (megacore) once the
            # BatchNorm accumulators get a cross-core reduction; with per-core
            # scratch it must stay serial for exact BN semantics.
            dimension_semantics=("arbitrary", "arbitrary"),
            vmem_limit_bytes=32 * 1024 * 1024,
        ),
    )(x, w1x, w1c, b1_c, gamma_c, beta_c, w2b, b2_c)

    return out


def reference(x_ncl, params, matmul_dtype=jnp.float32):
    """Pure-JAX re-statement of the PyTorch forward, for verification.

    matmul_dtype=jnp.bfloat16 mirrors the kernel's MXU casting (f32 accum)."""
    w1, b1, gamma, beta, w2, b2 = params
    N, C, L = x_ncl.shape
    x = x_ncl.astype(jnp.float32)
    mean_g = jnp.mean(x, axis=2)
    std_g = jnp.sqrt(jnp.maximum(jnp.mean((x - mean_g[:, :, None]) ** 2, axis=2), STAT_EPS))
    attn_in = jnp.concatenate(
        [x, jnp.repeat(mean_g[:, :, None], L, 2), jnp.repeat(std_g[:, :, None], L, 2)], axis=1)
    t = jnp.einsum('ac,ncl->nal', w1.astype(matmul_dtype), attn_in.astype(matmul_dtype),
                   preferred_element_type=jnp.float32) + b1.reshape(1, -1, 1)
    t = jnp.maximum(t, 0.0)
    bn_mean = jnp.mean(t, axis=(0, 2))
    bn_var = jnp.mean((t - bn_mean[None, :, None]) ** 2, axis=(0, 2))
    t = (t - bn_mean[None, :, None]) / jnp.sqrt(bn_var[None, :, None] + BN_EPS)
    t = t * gamma.reshape(1, -1, 1) + beta.reshape(1, -1, 1)
    t = jnp.tanh(t)
    s = jnp.einsum('ca,nal->ncl', w2.astype(matmul_dtype), t.astype(matmul_dtype),
                   preferred_element_type=jnp.float32) + b2.reshape(1, -1, 1)
    attn = jax.nn.softmax(s, axis=2)
    mean = jnp.sum(attn * x, axis=2)
    std = jnp.sqrt(jnp.maximum(jnp.sum(attn * (x - mean[:, :, None]) ** 2, axis=2), STAT_EPS))
    return jnp.concatenate([mean, std], axis=1)[:, :, None]


if __name__ == "__main__":
    N, C, L, A = 3, 16, 40, 32     # batch, channels, time, attention_channels
    key = jax.random.PRNGKey(0)
    k = jax.random.split(key, 5)

    x = jax.random.normal(k[0], (N, C, L), jnp.float32)

    # Deterministic synthetic parameters (PyTorch weight shapes with the
    # trailing kernel_size=1 dim squeezed out; BN affine at its default init).
    w1 = jax.random.normal(k[1], (A, 3 * C), jnp.float32) * (1.0 / math.sqrt(3 * C))
    b1 = jax.random.normal(k[2], (A,), jnp.float32) * 0.1
    gamma = jnp.ones((A,), jnp.float32)
    beta = jnp.zeros((A,), jnp.float32)
    w2 = jax.random.normal(k[3], (C, A), jnp.float32) * (1.0 / math.sqrt(A))
    b2 = jax.random.normal(k[4], (C,), jnp.float32) * 0.1
    params = (w1, b1, gamma, beta, w2, b2)

    out = jax.block_until_ready(attentive_statistics_pooling(x, params))
    assert out.shape == (N, 2 * C, 1), out.shape

    # Tight check vs a reference with matching bf16 matmul casting; loose check
    # vs the exact-f32 PyTorch-semantics reference (bf16 MXU rounding dominates).
    ref_bf16 = reference(x, params, matmul_dtype=jnp.bfloat16)
    ref_f32 = reference(x, params, matmul_dtype=jnp.float32)
    err_tight = jnp.max(jnp.abs(out - ref_bf16))
    err_loose = jnp.max(jnp.abs(out - ref_f32))
    assert jnp.allclose(out, ref_bf16, atol=2e-2, rtol=2e-2), err_tight
    assert jnp.allclose(out, ref_f32, atol=6e-2, rtol=6e-2), err_loose
    print("KERNEL_OK")
</pallas_src>

<mosaic_0001>
module attributes {stable_mosaic.version = 11 : i64} {
  func.func @asp_kernel(%arg0: i32, %arg1: i32, %arg2: memref<1x16x40xf32, #tpu.memory_space<vmem>>, %arg3: memref<32x16xbf16, #tpu.memory_space<vmem>>, %arg4: memref<32x32xbf16, #tpu.memory_space<vmem>>, %arg5: memref<32x1xf32, #tpu.memory_space<vmem>>, %arg6: memref<32x1xf32, #tpu.memory_space<vmem>>, %arg7: memref<32x1xf32, #tpu.memory_space<vmem>>, %arg8: memref<16x32xbf16, #tpu.memory_space<vmem>>, %arg9: memref<16x1xf32, #tpu.memory_space<vmem>>, %arg10: memref<1x32x1xf32, #tpu.memory_space<vmem>>, %arg11: memref<32x1xf32, #tpu.memory_space<vmem>>, %arg12: memref<32x1xf32, #tpu.memory_space<vmem>>) attributes {dimension_semantics = [#tpu.dimension_semantics<arbitrary>, #tpu.dimension_semantics<arbitrary>], iteration_bounds = array<i64: 2, 3>, scalar_prefetch = 0 : i64, scratch_operands = 2 : i64, tpu.core_type = #tpu.core_type<tc>, window_params = [{transform_indices = @transform_0, window_bounds = array<i64: 1, 16, 40>}, {pipeline_mode = #tpu.pipeline_mode<synchronous>, transform_indices = @transform_1, window_bounds = array<i64: 32, 16>}, {pipeline_mode = #tpu.pipeline_mode<synchronous>, transform_indices = @transform_2, window_bounds = array<i64: 32, 32>}, {pipeline_mode = #tpu.pipeline_mode<synchronous>, transform_indices = @transform_3, window_bounds = array<i64: 32, 1>}, {pipeline_mode = #tpu.pipeline_mode<synchronous>, transform_indices = @transform_4, window_bounds = array<i64: 32, 1>}, {pipeline_mode = #tpu.pipeline_mode<synchronous>, transform_indices = @transform_5, window_bounds = array<i64: 32, 1>}, {pipeline_mode = #tpu.pipeline_mode<synchronous>, transform_indices = @transform_6, window_bounds = array<i64: 16, 32>}, {pipeline_mode = #tpu.pipeline_mode<synchronous>, transform_indices = @transform_7, window_bounds = array<i64: 16, 1>}, {transform_indices = @transform_8, window_bounds = array<i64: 1, 32, 1>}]} {
    %c0 = arith.constant 0 : index
    %c0_0 = arith.constant 0 : index
    %c0_1 = arith.constant 0 : index
    %0 = vector.load %arg2[%c0, %c0_0, %c0_1] : memref<1x16x40xf32, #tpu.memory_space<vmem>>, vector<1x16x40xf32>
    %1 = vector.shape_cast %0 : vector<1x16x40xf32> to vector<16x40xf32>
    %cst = arith.constant dense<0.000000e+00> : vector<16xf32>
    %2 = vector.multi_reduction <add>, %1, %cst [1] : vector<16x40xf32> to vector<16xf32>
    %3 = vector.shape_cast %2 : vector<16xf32> to vector<16x1xf32>
    %cst_2 = arith.constant 2.500000e-02 : f32
    %4 = vector.broadcast %cst_2 : f32 to vector<16x1xf32>
    %5 = arith.mulf %3, %4 : vector<16x1xf32>
    %6 = arith.mulf %1, %1 : vector<16x40xf32>
    %cst_3 = arith.constant dense<0.000000e+00> : vector<16xf32>
    %7 = vector.multi_reduction <add>, %6, %cst_3 [1] : vector<16x40xf32> to vector<16xf32>
    %8 = vector.shape_cast %7 : vector<16xf32> to vector<16x1xf32>
    %cst_4 = arith.constant 2.500000e-02 : f32
    %9 = vector.broadcast %cst_4 : f32 to vector<16x1xf32>
    %10 = arith.mulf %8, %9 : vector<16x1xf32>
    %11 = arith.mulf %5, %5 : vector<16x1xf32>
    %12 = arith.subf %10, %11 : vector<16x1xf32>
    %cst_5 = arith.constant 9.99999996E-13 : f32
    %13 = vector.broadcast %cst_5 : f32 to vector<16x1xf32>
    %14 = arith.maximumf %12, %13 : vector<16x1xf32>
    %15 = math.sqrt %14 : vector<16x1xf32>
    %c0_6 = arith.constant 0 : index
    %c0_7 = arith.constant 0 : index
    %16 = vector.load %arg3[%c0_6, %c0_7] : memref<32x16xbf16, #tpu.memory_space<vmem>>, vector<32x16xbf16>
    %17 = arith.truncf %1 : vector<16x40xf32> to vector<16x40xbf16>
    %cst_8 = arith.constant dense<0.000000e+00> : vector<32x40xf32>
    %18 = tpu.matmul %16, %17, %cst_8 {dimension_numbers = #tpu.dot_dimension_numbers<[1], [0], [0], [1], [0, 0, 1, 1], [], []>} : vector<32x16xbf16>, vector<16x40xbf16>, vector<32x40xf32> -> vector<32x40xf32>
    %19 = tpu.concatenate %5, %15 in 0 : vector<16x1xf32>, vector<16x1xf32> -> vector<32x1xf32>
    %20 = arith.truncf %19 : vector<32x1xf32> to vector<32x1xbf16>
    %c0_9 = arith.constant 0 : index
    %c0_10 = arith.constant 0 : index
    %21 = vector.load %arg4[%c0_9, %c0_10] : memref<32x32xbf16, #tpu.memory_space<vmem>>, vector<32x32xbf16>
    %cst_11 = arith.constant dense<0.000000e+00> : vector<32x1xf32>
    %22 = tpu.matmul %21, %20, %cst_11 {dimension_numbers = #tpu.dot_dimension_numbers<[1], [0], [0], [1], [0, 0, 1, 1], [], []>} : vector<32x32xbf16>, vector<32x1xbf16>, vector<32x1xf32> -> vector<32x1xf32>
    %c0_12 = arith.constant 0 : index
    %c0_13 = arith.constant 0 : index
    %23 = vector.load %arg5[%c0_12, %c0_13] : memref<32x1xf32, #tpu.memory_space<vmem>>, vector<32x1xf32>
    %24 = arith.addf %22, %23 : vector<32x1xf32>
    %25 = vector.broadcast %24 : vector<32x1xf32> to vector<32x40xf32>
    %26 = arith.addf %18, %25 : vector<32x40xf32>
    %cst_14 = arith.constant 0.000000e+00 : f32
    %27 = vector.broadcast %cst_14 : f32 to vector<32x40xf32>
    %28 = arith.maximumf %26, %27 : vector<32x40xf32>
    %c0_i32 = arith.constant 0 : i32
    %29 = arith.cmpi eq, %arg0, %c0_i32 : i32
    %30 = arith.extui %29 : i1 to i32
    %c0_i32_15 = arith.constant 0 : i32
    %31 = arith.cmpi ne, %30, %c0_i32_15 : i32
    scf.if %31 {
      %c0_i32_17 = arith.constant 0 : i32
      %35 = arith.cmpi eq, %arg1, %c0_i32_17 : i32
      %36 = arith.extui %35 : i1 to i32
      %c0_i32_18 = arith.constant 0 : i32
      %37 = arith.cmpi ne, %36, %c0_i32_18 : i32
      scf.if %37 {
        %cst_29 = arith.constant 0.000000e+00 : f32
        %49 = vector.broadcast %cst_29 : f32 to vector<32x1xf32>
        %c0_30 = arith.constant 0 : index
        %c0_31 = arith.constant 0 : index
        %50 = vector.load %arg11[%c0_30, %c0_31] : memref<32x1xf32, #tpu.memory_space<vmem>>, vector<32x1xf32>
        tpu.vector_store %arg11[%c0_30, %c0_31], %49 {strides = array<i32>} : memref<32x1xf32, #tpu.memory_space<vmem>>, vector<32x1xf32>,
        %cst_32 = arith.constant 0.000000e+00 : f32
        %51 = vector.broadcast %cst_32 : f32 to vector<32x1xf32>
        %c0_33 = arith.constant 0 : index
        %c0_34 = arith.constant 0 : index
        %52 = vector.load %arg12[%c0_33, %c0_34] : memref<32x1xf32, #tpu.memory_space<vmem>>, vector<32x1xf32>
        tpu.vector_store %arg12[%c0_33, %c0_34], %51 {strides = array<i32>} : memref<32x1xf32, #tpu.memory_space<vmem>>, vector<32x1xf32>,
      } else {
      }
      %c0_19 = arith.constant 0 : index
      %c0_20 = arith.constant 0 : index
      %38 = vector.load %arg11[%c0_19, %c0_20] : memref<32x1xf32, #tpu.memory_space<vmem>>, vector<32x1xf32>
      %cst_21 = arith.constant dense<0.000000e+00> : vector<32xf32>
      %39 = vector.multi_reduction <add>, %28, %cst_21 [1] : vector<32x40xf32> to vector<32xf32>
      %40 = vector.shape_cast %39 : vector<32xf32> to vector<32x1xf32>
      %41 = arith.addf %38, %40 : vector<32x1xf32>
      %c0_22 = arith.constant 0 : index
      %c0_23 = arith.constant 0 : index
      %42 = vector.load %arg11[%c0_22, %c0_23] : memref<32x1xf32, #tpu.memory_space<vmem>>, vector<32x1xf32>
      tpu.vector_store %arg11[%c0_22, %c0_23], %41 {strides = array<i32>} : memref<32x1xf32, #tpu.memory_space<vmem>>, vector<32x1xf32>,
      %c0_24 = arith.constant 0 : index
      %c0_25 = arith.constant 0 : index
      %43 = vector.load %arg12[%c0_24, %c0_25] : memref<32x1xf32, #tpu.memory_space<vmem>>, vector<32x1xf32>
      %44 = arith.mulf %28, %28 : vector<32x40xf32>
      %cst_26 = arith.constant dense<0.000000e+00> : vector<32xf32>
      %45 = vector.multi_reduction <add>, %44, %cst_26 [1] : vector<32x40xf32> to vector<32xf32>
      %46 = vector.shape_cast %45 : vector<32xf32> to vector<32x1xf32>
      %47 = arith.addf %43, %46 : vector<32x1xf32>
      %c0_27 = arith.constant 0 : index
      %c0_28 = arith.constant 0 : index
      %48 = vector.load %arg12[%c0_27, %c0_28] : memref<32x1xf32, #tpu.memory_space<vmem>>, vector<32x1xf32>
      tpu.vector_store %arg12[%c0_27, %c0_28], %47 {strides = array<i32>} : memref<32x1xf32, #tpu.memory_space<vmem>>, vector<32x1xf32>,
    } else {
    }
    %c1_i32 = arith.constant 1 : i32
    %32 = arith.cmpi eq, %arg0, %c1_i32 : i32
    %33 = arith.extui %32 : i1 to i32
    %c0_i32_16 = arith.constant 0 : i32
    %34 = arith.cmpi ne, %33, %c0_i32_16 : i32
    scf.if %34 {
      %c0_17 = arith.constant 0 : index
      %c0_18 = arith.constant 0 : index
      %35 = vector.load %arg11[%c0_17, %c0_18] : memref<32x1xf32, #tpu.memory_space<vmem>>, vector<32x1xf32>
      %cst_19 = arith.constant 0.00833333377 : f32
      %36 = vector.broadcast %cst_19 : f32 to vector<32x1xf32>
      %37 = arith.mulf %35, %36 : vector<32x1xf32>
      %c0_20 = arith.constant 0 : index
      %c0_21 = arith.constant 0 : index
      %38 = vector.load %arg12[%c0_20, %c0_21] : memref<32x1xf32, #tpu.memory_space<vmem>>, vector<32x1xf32>
      %cst_22 = arith.constant 0.00833333377 : f32
      %39 = vector.broadcast %cst_22 : f32 to vector<32x1xf32>
      %40 = arith.mulf %38, %39 : vector<32x1xf32>
      %41 = arith.mulf %37, %37 : vector<32x1xf32>
      %42 = arith.subf %40, %41 : vector<32x1xf32>
      %c0_23 = arith.constant 0 : index
      %c0_24 = arith.constant 0 : index
      %43 = vector.load %arg6[%c0_23, %c0_24] : memref<32x1xf32, #tpu.memory_space<vmem>>, vector<32x1xf32>
      %cst_25 = arith.constant 9.99999974E-6 : f32
      %44 = vector.broadcast %cst_25 : f32 to vector<32x1xf32>
      %45 = arith.addf %42, %44 : vector<32x1xf32>
      %46 = math.rsqrt %45 : vector<32x1xf32>
      %47 = arith.mulf %43, %46 : vector<32x1xf32>
      %c0_26 = arith.constant 0 : index
      %c0_27 = arith.constant 0 : index
      %48 = vector.load %arg7[%c0_26, %c0_27] : memref<32x1xf32, #tpu.memory_space<vmem>>, vector<32x1xf32>
      %49 = arith.mulf %37, %47 : vector<32x1xf32>
      %50 = arith.subf %48, %49 : vector<32x1xf32>
      %51 = vector.broadcast %47 : vector<32x1xf32> to vector<32x40xf32>
      %52 = arith.mulf %28, %51 : vector<32x40xf32>
      %53 = vector.broadcast %50 : vector<32x1xf32> to vector<32x40xf32>
      %54 = arith.addf %52, %53 : vector<32x40xf32>
      %55 = math.tanh %54 : vector<32x40xf32>
      %c0_28 = arith.constant 0 : index
      %c0_29 = arith.constant 0 : index
      %56 = vector.load %arg8[%c0_28, %c0_29] : memref<16x32xbf16, #tpu.memory_space<vmem>>, vector<16x32xbf16>
      %57 = arith.truncf %55 : vector<32x40xf32> to vector<32x40xbf16>
      %cst_30 = arith.constant dense<0.000000e+00> : vector<16x40xf32>
      %58 = tpu.matmul %56, %57, %cst_30 {dimension_numbers = #tpu.dot_dimension_numbers<[1], [0], [0], [1], [0, 0, 1, 1], [], []>} : vector<16x32xbf16>, vector<32x40xbf16>, vector<16x40xf32> -> vector<16x40xf32>
      %c0_31 = arith.constant 0 : index
      %c0_32 = arith.constant 0 : index
      %59 = vector.load %arg9[%c0_31, %c0_32] : memref<16x1xf32, #tpu.memory_space<vmem>>, vector<16x1xf32>
      %60 = vector.broadcast %59 : vector<16x1xf32> to vector<16x40xf32>
      %61 = arith.addf %58, %60 : vector<16x40xf32>
      %cst_33 = arith.constant dense<0xFF800000> : vector<16xf32>
      %62 = vector.multi_reduction <maximumf>, %61, %cst_33 [1] : vector<16x40xf32> to vector<16xf32>
      %63 = vector.shape_cast %62 : vector<16xf32> to vector<16x1xf32>
      %64 = vector.broadcast %63 : vector<16x1xf32> to vector<16x40xf32>
      %65 = arith.subf %61, %64 : vector<16x40xf32>
      %66 = math.exp %65 : vector<16x40xf32>
      %cst_34 = arith.constant dense<0.000000e+00> : vector<16xf32>
      %67 = vector.multi_reduction <add>, %66, %cst_34 [1] : vector<16x40xf32> to vector<16xf32>
      %68 = vector.shape_cast %67 : vector<16xf32> to vector<16x1xf32>
      %69 = tpu.reciprocal %68 {approx = true} : vector<16x1xf32> -> vector<16x1xf32>
      %70 = vector.broadcast %69 : vector<16x1xf32> to vector<16x40xf32>
      %71 = arith.mulf %66, %70 : vector<16x40xf32>
      %72 = arith.mulf %71, %1 : vector<16x40xf32>
      %cst_35 = arith.constant dense<0.000000e+00> : vector<16xf32>
      %73 = vector.multi_reduction <add>, %72, %cst_35 [1] : vector<16x40xf32> to vector<16xf32>
      %74 = vector.shape_cast %73 : vector<16xf32> to vector<16x1xf32>
      %75 = arith.mulf %1, %1 : vector<16x40xf32>
      %76 = arith.mulf %71, %75 : vector<16x40xf32>
      %cst_36 = arith.constant dense<0.000000e+00> : vector<16xf32>
      %77 = vector.multi_reduction <add>, %76, %cst_36 [1] : vector<16x40xf32> to vector<16xf32>
      %78 = vector.shape_cast %77 : vector<16xf32> to vector<16x1xf32>
      %79 = arith.mulf %74, %74 : vector<16x1xf32>
      %80 = arith.subf %78, %79 : vector<16x1xf32>
      %cst_37 = arith.constant 9.99999996E-13 : f32
      %81 = vector.broadcast %cst_37 : f32 to vector<16x1xf32>
      %82 = arith.maximumf %80, %81 : vector<16x1xf32>
      %83 = math.sqrt %82 : vector<16x1xf32>
      %84 = tpu.concatenate %74, %83 in 0 : vector<16x1xf32>, vector<16x1xf32> -> vector<32x1xf32>
      %c0_38 = arith.constant 0 : index
      %c0_39 = arith.constant 0 : index
      %c0_40 = arith.constant 0 : index
      %85 = vector.load %arg10[%c0_38, %c0_39, %c0_40] : memref<1x32x1xf32, #tpu.memory_space<vmem>>, vector<1x32x1xf32>
      %86 = vector.shape_cast %85 : vector<1x32x1xf32> to vector<32x1xf32>
      %87 = vector.shape_cast %84 : vector<32x1xf32> to vector<1x32x1xf32>
      tpu.vector_store %arg10[%c0_38, %c0_39, %c0_40], %87 {strides = array<i32>} : memref<1x32x1xf32, #tpu.memory_space<vmem>>, vector<1x32x1xf32>,
    } else {
    }
    return
  }
  func.func @transform_0(%arg0: i32, %arg1: i32) -> (i32, i32, i32) {
    %c0_i32 = arith.constant 0 : i32
    %c0_i32_0 = arith.constant 0 : i32
    %c0_i32_1 = arith.constant 0 : i32
    return %arg1, %c0_i32, %c0_i32_0 : i32, i32, i32
  }
  func.func @transform_1(%arg0: i32, %arg1: i32) -> (i32, i32) {
    %c0_i32 = arith.constant 0 : i32
    %c0_i32_0 = arith.constant 0 : i32
    %c0_i32_1 = arith.constant 0 : i32
    return %c0_i32, %c0_i32_0 : i32, i32
  }
  func.func @transform_2(%arg0: i32, %arg1: i32) -> (i32, i32) {
    %c0_i32 = arith.constant 0 : i32
    %c0_i32_0 = arith.constant 0 : i32
    %c0_i32_1 = arith.constant 0 : i32
    return %c0_i32, %c0_i32_0 : i32, i32
  }
  func.func @transform_3(%arg0: i32, %arg1: i32) -> (i32, i32) {
    %c0_i32 = arith.constant 0 : i32
    %c0_i32_0 = arith.constant 0 : i32
    %c0_i32_1 = arith.constant 0 : i32
    return %c0_i32, %c0_i32_0 : i32, i32
  }
  func.func @transform_4(%arg0: i32, %arg1: i32) -> (i32, i32) {
    %c0_i32 = arith.constant 0 : i32
    %c0_i32_0 = arith.constant 0 : i32
    %c0_i32_1 = arith.constant 0 : i32
    return %c0_i32, %c0_i32_0 : i32, i32
  }
  func.func @transform_5(%arg0: i32, %arg1: i32) -> (i32, i32) {
    %c0_i32 = arith.constant 0 : i32
    %c0_i32_0 = arith.constant 0 : i32
    %c0_i32_1 = arith.constant 0 : i32
    return %c0_i32, %c0_i32_0 : i32, i32
  }
  func.func @transform_6(%arg0: i32, %arg1: i32) -> (i32, i32) {
    %c0_i32 = arith.constant 0 : i32
    %c0_i32_0 = arith.constant 0 : i32
    %c0_i32_1 = arith.constant 0 : i32
    return %c0_i32, %c0_i32_0 : i32, i32
  }
  func.func @transform_7(%arg0: i32, %arg1: i32) -> (i32, i32) {
    %c0_i32 = arith.constant 0 : i32
    %c0_i32_0 = arith.constant 0 : i32
    %c0_i32_1 = arith.constant 0 : i32
    return %c0_i32, %c0_i32_0 : i32, i32
  }
  func.func @transform_8(%arg0: i32, %arg1: i32) -> (i32, i32, i32) {
    %c0_i32 = arith.constant 0 : i32
    %c0_i32_0 = arith.constant 0 : i32
    %c0_i32_1 = arith.constant 0 : i32
    return %arg1, %c0_i32, %c0_i32_0 : i32, i32, i32
  }
}

</mosaic_0001>

<llo_original>
// kernel: tpu_custom_call.1
$region0: #{tpu_custom_call.1}
  #allocation0 [shape = 'u32[]', space=smem, size = 0x4, offset = 0x4, fixed_abs, tag = 'smem constant byte address 0x4 - core index']
  #allocation1 [shape = 'u32[144,128]{1,0:T(1,128)}', space=vmem, size = 0x12000, scoped, tag = 'internal scratch']
  #allocation2 [shape = 'f32[32,1]{1,0:T(8,128)}', space=vmem, size = 0x4000, scoped, tag = 'scratch operand']
  #allocation3 [shape = 'f32[32,1]{1,0:T(8,128)}', space=vmem, size = 0x4000, scoped, tag = 'scratch operand']
  %s0 = inlined_call_operand.vmem [shape: f32[3,16,40], index: 0, kind: input, shape index: {}]
  %s1 = inlined_call_operand.vmem [shape: bf16[32,16], index: 1, kind: input, shape index: {}]
  %s2 = inlined_call_operand.vmem [shape: bf16[32,32], index: 2, kind: input, shape index: {}]
  %s3 = inlined_call_operand.vmem [shape: f32[32,1], index: 3, kind: input, shape index: {}]
  %s4 = inlined_call_operand.vmem [shape: f32[32,1], index: 4, kind: input, shape index: {}]
  %s5 = inlined_call_operand.vmem [shape: f32[32,1], index: 5, kind: input, shape index: {}]
  %s6 = inlined_call_operand.vmem [shape: bf16[16,32], index: 6, kind: input, shape index: {}]
  %s7 = inlined_call_operand.vmem [shape: f32[16,1], index: 7, kind: input, shape index: {}]
  %s8 = inlined_call_operand.vmem [shape: f32[3,32,1], index: 8, kind: output, shape index: {}]
  %s9 = sld [smem:[#allocation0]]
  $region77: #{tpu_custom_call.1} parent=0
    _
  %s11 = ssub.s32 1, %s9
  %s12 = scalar_select 0, %s11, %s9
  loop: start=0, step=1, limit=8
  $region2: #{tpu_custom_call.1} parent=0 // loop_pre_header
    _
  $region3: #{tpu_custom_call.1} parent=0 // loop_header
    %s14 = sphi 0, %s18
    %p15 = scmp.ge.s32.totalorder %s14, 8
    %s21 = sphi 0, %s33
    %s22 = sphi 0, %s29
    %s23 = sphi 0, %s21
    %s24 = sphi 0, %s22
    %s25 = sphi 0, %s23
    %s26 = sphi 0, %s24
    %s36 = sphi 0, %s38
    %s39 = sphi 0, %s36
    %s40 = sphi 0, %s39
    %s56 = sphi 0, %s40
    %s60 = sphi 0, %s60
    %s62 = sphi 0, %s60
    %s63 = sphi 0, %s62
    %s77 = sphi 0, %s63
    %s81 = sphi 0, %s81
    %s83 = sphi 0, %s81
    %s84 = sphi 0, %s83
    %s98 = sphi 0, %s84
    %s102 = sphi 0, %s102
    %s104 = sphi 0, %s102
    %s105 = sphi 0, %s104
    %s119 = sphi 0, %s105
    %s123 = sphi 0, %s123
    %s125 = sphi 0, %s123
    %s126 = sphi 0, %s125
    %s140 = sphi 0, %s126
    %s144 = sphi 0, %s144
    %s146 = sphi 0, %s144
    %s147 = sphi 0, %s146
    %s161 = sphi 0, %s147
    %s165 = sphi 0, %s165
    %s167 = sphi 0, %s165
    %s168 = sphi 0, %s167
    %s182 = sphi 0, %s168
    %s186 = sphi 0, %s186
    %s188 = sphi 0, %s186
    %s189 = sphi 0, %s188
    %s203 = sphi 0, %s189
    %s209 = sphi 0, %s211
    %s212 = sphi 0, %s209
    %s213 = sphi 0, %s212
    %s229 = sphi 0, %s213
  $region4: #{tpu_custom_call.1} parent=0 // loop_header_branch
    %17 = sbr.rel (%p15) target = $region8
  $region5: #{tpu_custom_call.1} parent=0 // loop_body
    %s19 = ssub.s32 %s14, 1
    %s20 = ssub.s32 %s14, 2
    %s27 = sadd.s32 1, %s22
    %p28 = scmp.ge.s32.totalorder %s27, 3
    %s29 = scalar_select %p28, 0, %s27
    %s30 = sadd.s32 1, %s21
    %s31 = scalar_select %p28, %s30, %s21
    %p32 = scmp.ge.s32.totalorder %s31, 2
    %s33 = scalar_select %p32, 0, %s31
    %s34 = ssub.s32 %s22, %s29
    %p35 = scmp.eq.s32.totalorder %s34, 0
    %s37 = sadd.s32 %s36, 1
    %s38 = scalar_select %p35, %s36, %s37
    %p41 = pneg %p35
    %p42 = scmp.eq.s32.totalorder %s14, 5
    %p43 = por %p41, %p42
    %p44 = scmp.ne.s32.totalorder %s36, %s39
    %p45 = scmp.eq.s32.totalorder %s14, 0
    %p46 = por %p44, %p45
    %p47 = scmp.ne.s32.totalorder %s36, %s39
    %p48 = scmp.eq.s32.totalorder %s19, 5
    %p49 = por %p47, %p48
    %p50 = scmp.ne.s32.totalorder %s39, %s40
    %p51 = scmp.eq.s32.totalorder %s19, 0
    %p52 = por %p50, %p51
    %p53 = scmp.ne.s32.totalorder %s39, %s40
    %p54 = scmp.eq.s32.totalorder %s20, 5
    %p55 = por %p53, %p54
    %p57 = scmp.ne.s32.totalorder %s40, %s56
    %p58 = scmp.eq.s32.totalorder %s20, 0
    %p59 = por %p57, %p58
    %s61 = sadd.s32 %s60, 1
    %p64 = scmp.eq.s32.totalorder %s14, 5
    %p65 = scmp.ne.s32.totalorder %s60, %s62
    %p66 = scmp.eq.s32.totalorder %s14, 0
    %p67 = por %p65, %p66
    %p68 = scmp.ne.s32.totalorder %s60, %s62
    %p69 = scmp.eq.s32.totalorder %s19, 5
    %p70 = por %p68, %p69
    %p71 = scmp.ne.s32.totalorder %s62, %s63
    %p72 = scmp.eq.s32.totalorder %s19, 0
    %p73 = por %p71, %p72
    %p74 = scmp.ne.s32.totalorder %s62, %s63
    %p75 = scmp.eq.s32.totalorder %s20, 5
    %p76 = por %p74, %p75
    %p78 = scmp.ne.s32.totalorder %s63, %s77
    %p79 = scmp.eq.s32.totalorder %s20, 0
    %p80 = por %p78, %p79
    %s82 = sadd.s32 %s81, 1
    %p85 = scmp.eq.s32.totalorder %s14, 5
    %p86 = scmp.ne.s32.totalorder %s81, %s83
    %p87 = scmp.eq.s32.totalorder %s14, 0
    %p88 = por %p86, %p87
    %p89 = scmp.ne.s32.totalorder %s81, %s83
    %p90 = scmp.eq.s32.totalorder %s19, 5
    %p91 = por %p89, %p90
    %p92 = scmp.ne.s32.totalorder %s83, %s84
    %p93 = scmp.eq.s32.totalorder %s19, 0
    %p94 = por %p92, %p93
    %p95 = scmp.ne.s32.totalorder %s83, %s84
    %p96 = scmp.eq.s32.totalorder %s20, 5
    %p97 = por %p95, %p96
    %p99 = scmp.ne.s32.totalorder %s84, %s98
    %p100 = scmp.eq.s32.totalorder %s20, 0
    %p101 = por %p99, %p100
    %s103 = sadd.s32 %s102, 1
    %p106 = scmp.eq.s32.totalorder %s14, 5
    %p107 = scmp.ne.s32.totalorder %s102, %s104
    %p108 = scmp.eq.s32.totalorder %s14, 0
    %p109 = por %p107, %p108
    %p110 = scmp.ne.s32.totalorder %s102, %s104
    %p111 = scmp.eq.s32.totalorder %s19, 5
    %p112 = por %p110, %p111
    %p113 = scmp.ne.s32.totalorder %s104, %s105
    %p114 = scmp.eq.s32.totalorder %s19, 0
    %p115 = por %p113, %p114
    %p116 = scmp.ne.s32.totalorder %s104, %s105
    %p117 = scmp.eq.s32.totalorder %s20, 5
    %p118 = por %p116, %p117
    %p120 = scmp.ne.s32.totalorder %s105, %s119
    %p121 = scmp.eq.s32.totalorder %s20, 0
    %p122 = por %p120, %p121
    %s124 = sadd.s32 %s123, 1
    %p127 = scmp.eq.s32.totalorder %s14, 5
    %p128 = scmp.ne.s32.totalorder %s123, %s125
    %p129 = scmp.eq.s32.totalorder %s14, 0
    %p130 = por %p128, %p129
    %p131 = scmp.ne.s32.totalorder %s123, %s125
    %p132 = scmp.eq.s32.totalorder %s19, 5
    %p133 = por %p131, %p132
    %p134 = scmp.ne.s32.totalorder %s125, %s126
    %p135 = scmp.eq.s32.totalorder %s19, 0
    %p136 = por %p134, %p135
    %p137 = scmp.ne.s32.totalorder %s125, %s126
    %p138 = scmp.eq.s32.totalorder %s20, 5
    %p139 = por %p137, %p138
    %p141 = scmp.ne.s32.totalorder %s126, %s140
    %p142 = scmp.eq.s32.totalorder %s20, 0
    %p143 = por %p141, %p142
    %s145 = sadd.s32 %s144, 1
    %p148 = scmp.eq.s32.totalorder %s14, 5
    %p149 = scmp.ne.s32.totalorder %s144, %s146
    %p150 = scmp.eq.s32.totalorder %s14, 0
    %p151 = por %p149, %p150
    %p152 = scmp.ne.s32.totalorder %s144, %s146
    %p153 = scmp.eq.s32.totalorder %s19, 5
    %p154 = por %p152, %p153
    %p155 = scmp.ne.s32.totalorder %s146, %s147
    %p156 = scmp.eq.s32.totalorder %s19, 0
    %p157 = por %p155, %p156
    %p158 = scmp.ne.s32.totalorder %s146, %s147
    %p159 = scmp.eq.s32.totalorder %s20, 5
    %p160 = por %p158, %p159
    %p162 = scmp.ne.s32.totalorder %s147, %s161
    %p163 = scmp.eq.s32.totalorder %s20, 0
    %p164 = por %p162, %p163
    %s166 = sadd.s32 %s165, 1
    %p169 = scmp.eq.s32.totalorder %s14, 5
    %p170 = scmp.ne.s32.totalorder %s165, %s167
    %p171 = scmp.eq.s32.totalorder %s14, 0
    %p172 = por %p170, %p171
    %p173 = scmp.ne.s32.totalorder %s165, %s167
    %p174 = scmp.eq.s32.totalorder %s19, 5
    %p175 = por %p173, %p174
    %p176 = scmp.ne.s32.totalorder %s167, %s168
    %p177 = scmp.eq.s32.totalorder %s19, 0
    %p178 = por %p176, %p177
    %p179 = scmp.ne.s32.totalorder %s167, %s168
    %p180 = scmp.eq.s32.totalorder %s20, 5
    %p181 = por %p179, %p180
    %p183 = scmp.ne.s32.totalorder %s168, %s182
    %p184 = scmp.eq.s32.totalorder %s20, 0
    %p185 = por %p183, %p184
    %s187 = sadd.s32 %s186, 1
    %p190 = scmp.eq.s32.totalorder %s14, 5
    %p191 = scmp.ne.s32.totalorder %s186, %s188
    %p192 = scmp.eq.s32.totalorder %s14, 0
    %p193 = por %p191, %p192
    %p194 = scmp.ne.s32.totalorder %s186, %s188
    %p195 = scmp.eq.s32.totalorder %s19, 5
    %p196 = por %p194, %p195
    %p197 = scmp.ne.s32.totalorder %s188, %s189
    %p198 = scmp.eq.s32.totalorder %s19, 0
    %p199 = por %p197, %p198
    %p200 = scmp.ne.s32.totalorder %s188, %s189
    %p201 = scmp.eq.s32.totalorder %s20, 5
    %p202 = por %p200, %p201
    %p204 = scmp.ne.s32.totalorder %s189, %s203
    %p205 = scmp.eq.s32.totalorder %s20, 0
    %p206 = por %p204, %p205
    %s207 = ssub.s32 %s22, %s29
    %p208 = scmp.eq.s32.totalorder %s207, 0
    %s210 = sadd.s32 %s209, 1
    %s211 = scalar_select %p208, %s209, %s210
    %p214 = pneg %p208
    %p215 = scmp.eq.s32.totalorder %s14, 5
    %p216 = por %p214, %p215
    %p217 = scmp.ne.s32.totalorder %s209, %s212
    %p218 = scmp.eq.s32.totalorder %s14, 0
    %p219 = por %p217, %p218
    %p220 = scmp.ne.s32.totalorder %s209, %s212
    %p221 = scmp.eq.s32.totalorder %s19, 5
    %p222 = por %p220, %p221
    %p223 = scmp.ne.s32.totalorder %s212, %s213
    %p224 = scmp.eq.s32.totalorder %s19, 0
    %p225 = por %p223, %p224
    %p226 = scmp.ne.s32.totalorder %s212, %s213
    %p227 = scmp.eq.s32.totalorder %s20, 5
    %p228 = por %p226, %p227
    %p230 = scmp.ne.s32.totalorder %s213, %s229
    %p231 = scmp.eq.s32.totalorder %s20, 0
    %p232 = por %p230, %p231
    %p233 = scmp.le.s32.totalorder 1, %s14
    %p234 = scmp.lt.s32.totalorder %s14, 7
    %p235 = pnand %p233, %p234
    %p236 = pneg %p235
    // Predicated region
    $region9: #{tpu_custom_call.1} parent=5 // pred_check
      _
    $region10: #{tpu_custom_call.1} parent=5 // pred_check_branch
      %238 = sbr.rel (%p235) target = $region12
    $region11: #{tpu_custom_call.1} parent=5 // pred_region
      %s239 = ssub.s32 %s14, 1
      // Predicated region
      $region13: #{tpu_custom_call.1} parent=11 // pred_check
        %p240 = pneg %p73
      $region14: #{tpu_custom_call.1} parent=11 // pred_check_branch
        %242 = sbr.rel (%p240) target = $region16
      $region15: #{tpu_custom_call.1} parent=11 // pred_region
        _
      $region16: #{tpu_custom_call.1} parent=11 // pred_fallthru
        _
      // Predicated region
      $region17: #{tpu_custom_call.1} parent=11 // pred_check
        %p243 = pneg %p94
      $region18: #{tpu_custom_call.1} parent=11 // pred_check_branch
        %245 = sbr.rel (%p243) target = $region20
      $region19: #{tpu_custom_call.1} parent=11 // pred_region
        _
      $region20: #{tpu_custom_call.1} parent=11 // pred_fallthru
        _
      // Predicated region
      $region21: #{tpu_custom_call.1} parent=11 // pred_check
        %p246 = pneg %p115
      $region22: #{tpu_custom_call.1} parent=11 // pred_check_branch
        %248 = sbr.rel (%p246) target = $region24
      $region23: #{tpu_custom_call.1} parent=11 // pred_region
        _
      $region24: #{tpu_custom_call.1} parent=11 // pred_fallthru
        _
      // Predicated region
      $region25: #{tpu_custom_call.1} parent=11 // pred_check
        %p249 = pneg %p136
      $region26: #{tpu_custom_call.1} parent=11 // pred_check_branch
        %251 = sbr.rel (%p249) target = $region28
      $region27: #{tpu_custom_call.1} parent=11 // pred_region
        _
      $region28: #{tpu_custom_call.1} parent=11 // pred_fallthru
        _
      // Predicated region
      $region29: #{tpu_custom_call.1} parent=11 // pred_check
        %p252 = pneg %p157
      $region30: #{tpu_custom_call.1} parent=11 // pred_check_branch
        %254 = sbr.rel (%p252) target = $region32
      $region31: #{tpu_custom_call.1} parent=11 // pred_region
        _
      $region32: #{tpu_custom_call.1} parent=11 // pred_fallthru
        _
      // Predicated region
      $region33: #{tpu_custom_call.1} parent=11 // pred_check
        %p255 = pneg %p178
      $region34: #{tpu_custom_call.1} parent=11 // pred_check_branch
        %257 = sbr.rel (%p255) target = $region36
      $region35: #{tpu_custom_call.1} parent=11 // pred_region
        _
      $region36: #{tpu_custom_call.1} parent=11 // pred_fallthru
        _
      // Predicated region
      $region37: #{tpu_custom_call.1} parent=11 // pred_check
        %p258 = pneg %p199
      $region38: #{tpu_custom_call.1} parent=11 // pred_check_branch
        %260 = sbr.rel (%p258) target = $region40
      $region39: #{tpu_custom_call.1} parent=11 // pred_region
        _
      $region40: #{tpu_custom_call.1} parent=11 // pred_fallthru
        _
    $region12: #{tpu_custom_call.1} parent=5 // pred_fallthru
      _
    %p261 = scmp.lt.s32.totalorder %s14, 6
    // Predicated region
    $region41: #{tpu_custom_call.1} parent=5 // pred_check
      %p262 = pneg %p261
    $region42: #{tpu_custom_call.1} parent=5 // pred_check_branch
      %264 = sbr.rel (%p262) target = $region44
    $region43: #{tpu_custom_call.1} parent=5 // pred_region
      // Predicated region
      $region45: #{tpu_custom_call.1} parent=43 // pred_check
        %p265 = pneg %p46
      $region46: #{tpu_custom_call.1} parent=43 // pred_check_branch
        %267 = sbr.rel (%p265) target = $region48
      $region47: #{tpu_custom_call.1} parent=43 // pred_region
        %p268 = scmp.lt.s32.totalorder %s22, 2
        %s269 = scalar_select %p268, %s22, 2
        %s270 = smul.addr %s269, 2
        %s271 = smul.addr %s270, 8
        %s272 = scalar_lea.vmem %s0, %s271
      $region48: #{tpu_custom_call.1} parent=43 // pred_fallthru
        _
    $region44: #{tpu_custom_call.1} parent=5 // pred_fallthru
      _
    %p273 = scmp.le.s32.totalorder 1, %s14
    %p274 = scmp.lt.s32.totalorder %s14, 7
    %p275 = pnand %p273, %p274
    %p276 = pneg %p275
    // Predicated region
    $region49: #{tpu_custom_call.1} parent=5 // pred_check
      _
    $region50: #{tpu_custom_call.1} parent=5 // pred_check_branch
      %278 = sbr.rel (%p275) target = $region52
    $region51: #{tpu_custom_call.1} parent=5 // pred_region
      %s279 = ssub.s32 %s14, 1
      %p280 = scmp.lt.s32.totalorder %s24, 2
      %s281 = scalar_select %p280, %s24, 2
      %s282 = smul.addr %s281, 2
      %s283 = smul.addr %s282, 8
      %s284 = scalar_lea.vmem %s0, %s283
      %p285 = pneg %p52
      %p286 = pneg %p49
      %p287 = pneg %p73
      %p288 = pneg %p70
      %p289 = pneg %p94
      %p290 = pneg %p91
      %p291 = pneg %p115
      %p292 = pneg %p112
      %p293 = pneg %p136
      %p294 = pneg %p133
      %p295 = pneg %p157
      %p296 = pneg %p154
      %p297 = pneg %p178
      %p298 = pneg %p175
      %p299 = pneg %p199
      %p300 = pneg %p196
      %p301 = pneg %p225
      %p302 = pneg %p222
      %p303 = scmp.lt.s32.totalorder %s24, 2
      %s304 = scalar_select %p303, %s24, 2
      %s305 = smul.addr %s304, 4
      %s306 = smul.addr %s305, 8
      %s307 = scalar_lea.vmem %s8, %s306
      %p308 = scmp.lt.s32.totalorder %s24, 2
      %s309 = scalar_select %p308, %s24, 2
      %s310 = smul.addr %s309, 2
      %s311 = smul.addr %s310, 8
      %s312 = scalar_lea.vmem %s0, %s311
      %p313 = scmp.lt.s32.totalorder %s24, 2
      %s314 = scalar_select %p313, %s24, 2
      %s315 = smul.addr %s314, 4
      %s316 = smul.addr %s315, 8
      %s317 = scalar_lea.vmem %s8, %s316
      %v319 = vld [vmem:[%s312] sm:$0xff]
      %v320 = vld [vmem:[%s312 + $0x8] sm:$0xff]
      %vm321 = vcmask 326656
      %v322 = vsel %vm321, %v319, 0.0
      %323 = vadd.xlane.f32.xlu0 %v322
      %v324 = vpop.xlane.xlu0 %323
      %v325 = vsel %vm321, %v320, 0.0
      %326 = vadd.xlane.f32.xlu0 %v325
      %v327 = vpop.xlane.xlu0 %326
      %v328 = vmul.f32 %v324, 0.025
      %v329 = vmul.f32 %v327, 0.025
      %v330 = vmul.f32 %v319, %v319
      %v331 = vmul.f32 %v320, %v320
      %v332 = vsel %vm321, %v330, 0.0
      %333 = vadd.xlane.f32.xlu0 %v332
      %v334 = vpop.xlane.xlu0 %333
      %v335 = vsel %vm321, %v331, 0.0
      %336 = vadd.xlane.f32.xlu0 %v335
      %v337 = vpop.xlane.xlu0 %336
      %v338 = vmul.f32 %v334, 0.025
      %v339 = vmul.f32 %v337, 0.025
      %v340 = vmul.f32 %v328, %v328
      %v341 = vmul.f32 %v329, %v329
      %v342 = vsub.f32 %v338, %v340
      %v343 = vsub.f32 %v339, %v341
      %v344 = vmax.f32 %v342, 1e-12
      %v345 = vmax.f32 %v343, 1e-12
      %v346 = vrsqrt.pop %v344
      %v347 = vmul.f32 %v344, %v346
      %vm348 = vcmp.eq.f32.partialorder %v344, inf
      %v349 = vsel %vm348, %v344, %v347
      %vm350 = vcmp.eq.f32.partialorder %v344, 0.0
      %v351 = vand.u32 %v344, 2147483648
      %v352 = vsel %vm350, %v351, %v349
      %v353 = vrsqrt.pop %v345
      %v354 = vmul.f32 %v345, %v353
      %vm355 = vcmp.eq.f32.partialorder %v345, inf
      %v356 = vsel %vm355, %v345, %v354
      %vm357 = vcmp.eq.f32.partialorder %v345, 0.0
      %v358 = vand.u32 %v345, 2147483648
      %v359 = vsel %vm357, %v358, %v356
      %v360 = vld [vmem:[%s1] sm:$0xf]
      %v361 = vld [vmem:[%s1 + $0x4] sm:$0xf]
      %v362 = vld [vmem:[%s1 + $0x8] sm:$0xf]
      %v363 = vld [vmem:[%s1 + $0xc] sm:$0xf]
      %v364 = vpack.c.bf16 %v320, %v319
      %v365 = vpack.c.bf16 %v329, %v328
      %v366 = vpack.c.bf16 %v359, %v352
      %v367 = vld [vmem:[%s2] sm:$0xf]
      %v368 = vld [vmem:[%s2 + $0x4] sm:$0xf]
      %v369 = vld [vmem:[%s2 + $0x8] sm:$0xf]
      %v370 = vld [vmem:[%s2 + $0xc] sm:$0xf]
      %v371 = vld [vmem:[%s3] sm:$0xff]
      %v372 = vld [vmem:[%s3 + $0x8] sm:$0xff]
      %v373 = vld [vmem:[%s3 + $0x10] sm:$0xff]
      %v374 = vld [vmem:[%s3 + $0x18] sm:$0xff]
      %v379 = vunpack.c.l.b16 %v367
      %v380 = vunpack.c.l.b16 %v368
      %v381 = vunpack.c.l.b16 %v369
      %v382 = vunpack.c.l.b16 %v370
      %v383 = vpack.c.b16 %v380, %v379
      %v384 = vpack.c.b16 %v382, %v381
      %vm385 = vcmask 261120
      %v387 = vsel %vm385, %v383, 0
      %v390 = vsel %vm385, %v384, 0
      %392 = vmatprep.subr.bf16.mxu0 0
      %393 = vmatpush1.bf16.msra.mxu0 %v365
      %394 = vmatprep.subr.bf16.mxu0 0
      %395 = vmatpush1.bf16.msra.mxu0 %v366
      %396 = vmatprep.subr.bf16.mxu0 0
      %397 = vmatpush1.bf16.msra.mxu0 0
      %398 = vmatprep.subr.bf16.mxu0 0
      %399 = vmatpush1.bf16.msra.mxu0 0
      %400 = vmatprep.subr.bf16.mxu0 0
      %401 = vmatpush1.bf16.msra.mxu0 0
      %402 = vmatprep.subr.bf16.mxu0 0
      %403 = vmatpush1.bf16.msra.mxu0 0
      %404 = vmatprep.subr.bf16.mxu0 0
      %405 = vmatpush1.bf16.msra.mxu0 0
      %406 = vmatprep.subr.bf16.mxu0 0
      %407 = vmatpush1.bf16.msra.mxu0 0
      %408 = vmatprep.subr.bf16.mxu0 0
      %409 = vmatpush1.bf16.msra.mxu0 0
      %410 = vmatprep.subr.bf16.mxu0 0
      %411 = vmatpush1.bf16.msra.mxu0 0
      %412 = vmatprep.subr.bf16.mxu0 0
      %413 = vmatpush1.bf16.msra.mxu0 0
      %414 = vmatprep.subr.bf16.mxu0 0
      %415 = vmatpush1.bf16.msra.mxu0 0
      %416 = vmatprep.subr.bf16.mxu0 0
      %417 = vmatpush1.bf16.msra.mxu0 0
      %418 = vmatprep.subr.bf16.mxu0 0
      %419 = vmatpush1.bf16.msra.mxu0 0
      %420 = vmatprep.subr.bf16.mxu0 0
      %421 = vmatpush1.bf16.msra.mxu0 0
      %422 = vmatprep.subr.bf16.mxu0 0
      %423 = vmatpush1.bf16.msra.mxu0 0
      %424 = vmatprep.mubr.bf16.mxu0 0
      %425 = vmatmul.mubr.bf16.gmra.mrb[0].mxu0 %v387
      %v426 = vpop.f32.mrb[0].mxu0
      %v427 = vadd.f32 %v371, %v426
      %v428 = vpop.f32.mrb[0].mxu0
      %v429 = vpop.f32.mrb[0].mxu0
      %v430 = vadd.f32 %v372, %v429
      %v431 = vpop.f32.mrb[0].mxu0
      %432 = vmatprep.mubr.bf16.mxu0 0
      %433 = vmatmul.mubr.bf16.gmra.mrb[0].mxu0 %v390
      %v434 = vpop.f32.mrb[0].mxu0
      %v435 = vadd.f32 %v373, %v434
      %v436 = vpop.f32.mrb[0].mxu0
      %v437 = vpop.f32.mrb[0].mxu0
      %v438 = vadd.f32 %v374, %v437
      %v439 = vpop.f32.mrb[0].mxu0
      %440 = vdwg.mxu0
      %442 = vset.pattern.permute.xlu0 0
      %443 = vperm.xlu0 %442, %v427
      %v444 = vpop.permute.xlu0 %443
      %447 = vset.pattern.permute.xlu0 0
      %448 = vperm.xlu0 %447, %v430
      %v449 = vpop.permute.xlu0 %448
      %452 = vset.pattern.permute.xlu0 0
      %453 = vperm.xlu0 %452, %v435
      %v454 = vpop.permute.xlu0 %453
      %457 = vset.pattern.permute.xlu0 0
      %458 = vperm.xlu0 %457, %v438
      %v459 = vpop.permute.xlu0 %458
      %v465 = vunpack.c.l.b16 %v360
      %v466 = vunpack.c.l.b16 %v361
      %v467 = vunpack.c.l.b16 %v362
      %v468 = vunpack.c.l.b16 %v363
      %v469 = vpack.c.b16 %v466, %v465
      %v470 = vpack.c.b16 %v468, %v467
      %vm471 = vcmask 130048
      %v473 = vsel %vm471, %v469, 0
      %v476 = vsel %vm471, %v470, 0
      %478 = vmatprep.subr.bf16.mxu0 0
      %479 = vmatpush1.bf16.msra.mxu0 %v364
      %480 = vmatprep.subr.bf16.mxu0 0
      %481 = vmatpush1.bf16.msra.mxu0 0
      %482 = vmatprep.subr.bf16.mxu0 0
      %483 = vmatpush1.bf16.msra.mxu0 0
      %484 = vmatprep.subr.bf16.mxu0 0
      %485 = vmatpush1.bf16.msra.mxu0 0
      %486 = vmatprep.subr.bf16.mxu0 0
      %487 = vmatpush1.bf16.msra.mxu0 0
      %488 = vmatprep.subr.bf16.mxu0 0
      %489 = vmatpush1.bf16.msra.mxu0 0
      %490 = vmatprep.subr.bf16.mxu0 0
      %491 = vmatpush1.bf16.msra.mxu0 0
      %492 = vmatprep.subr.bf16.mxu0 0
      %493 = vmatpush1.bf16.msra.mxu0 0
      %494 = vmatprep.subr.bf16.mxu0 0
      %495 = vmatpush1.bf16.msra.mxu0 0
      %496 = vmatprep.subr.bf16.mxu0 0
      %497 = vmatpush1.bf16.msra.mxu0 0
      %498 = vmatprep.subr.bf16.mxu0 0
      %499 = vmatpush1.bf16.msra.mxu0 0
      %500 = vmatprep.subr.bf16.mxu0 0
      %501 = vmatpush1.bf16.msra.mxu0 0
      %502 = vmatprep.subr.bf16.mxu0 0
      %503 = vmatpush1.bf16.msra.mxu0 0
      %504 = vmatprep.subr.bf16.mxu0 0
      %505 = vmatpush1.bf16.msra.mxu0 0
      %506 = vmatprep.subr.bf16.mxu0 0
      %507 = vmatpush1.bf16.msra.mxu0 0
      %508 = vmatprep.subr.bf16.mxu0 0
      %509 = vmatpush1.bf16.msra.mxu0 0
      %510 = vmatprep.mubr.bf16.mxu0 0
      %511 = vmatmul.mubr.bf16.gmra.mrb[0].mxu0 %v473
      %v512 = vpop.f32.mrb[0].mxu0
      %v513 = vadd.f32 %v444, %v512
      %v514 = vpop.f32.mrb[0].mxu0
      %v515 = vpop.f32.mrb[0].mxu0
      %v516 = vadd.f32 %v449, %v515
      %v517 = vpop.f32.mrb[0].mxu0
      %518 = vmatprep.mubr.bf16.mxu0 0
      %519 = vmatmul.mubr.bf16.gmra.mrb[0].mxu0 %v476
      %v520 = vpop.f32.mrb[0].mxu0
      %v521 = vadd.f32 %v454, %v520
      %v522 = vpop.f32.mrb[0].mxu0
      %v523 = vpop.f32.mrb[0].mxu0
      %v524 = vadd.f32 %v459, %v523
      %v525 = vpop.f32.mrb[0].mxu0
      %526 = vdwg.mxu0
      %v527 = vmax.f32 %v513, 0.0
      %v528 = vmax.f32 %v516, 0.0
      %v529 = vmax.f32 %v521, 0.0
      %v530 = vmax.f32 %v524, 0.0
      %p531 = scmp.eq.s32.totalorder %s23, 0
      // Predicated region
      $region53: #{tpu_custom_call.1} parent=51 // pred_check
        %p532 = pneg %p531
      $region54: #{tpu_custom_call.1} parent=51 // pred_check_branch
        %534 = sbr.rel (%p532) target = $region56
      $region55: #{tpu_custom_call.1} parent=51 // pred_region
        %p535 = scmp.eq.s32.totalorder %s24, 0
        // Predicated region
        $region57: #{tpu_custom_call.1} parent=55 // pred_check
          %p536 = pneg %p535
        $region58: #{tpu_custom_call.1} parent=55 // pred_check_branch
          %538 = sbr.rel (%p536) target = $region60
        $region59: #{tpu_custom_call.1} parent=55 // pred_region
          %vm539 = vcmask 7168
          %540 = vst.msk [vmem:[#allocation2] sm:$0xff] %vm539, 0.0
          %541 = vst.msk [vmem:[#allocation2 + $0x8] sm:$0xff] %vm539, 0.0
          %542 = vst.msk [vmem:[#allocation2 + $0x10] sm:$0xff] %vm539, 0.0
          %543 = vst.msk [vmem:[#allocation2 + $0x18] sm:$0xff] %vm539, 0.0
          %544 = vst.msk [vmem:[#allocation3] sm:$0xff] %vm539, 0.0
          %545 = vst.msk [vmem:[#allocation3 + $0x8] sm:$0xff] %vm539, 0.0
          %546 = vst.msk [vmem:[#allocation3 + $0x10] sm:$0xff] %vm539, 0.0
          %547 = vst.msk [vmem:[#allocation3 + $0x18] sm:$0xff] %vm539, 0.0
        $region60: #{tpu_custom_call.1} parent=55 // pred_fallthru
          _
        %v548 = vld [vmem:[#allocation2] sm:$0xff]
        %v549 = vld [vmem:[#allocation2 + $0x8] sm:$0xff]
        %v550 = vld [vmem:[#allocation2 + $0x10] sm:$0xff]
        %v551 = vld [vmem:[#allocation2 + $0x18] sm:$0xff]
        %v552 = vsel %vm321, %v527, 0.0
        %553 = vadd.xlane.f32.xlu0 %v552
        %v554 = vpop.xlane.xlu0 %553
        %v555 = vsel %vm321, %v528, 0.0
        %556 = vadd.xlane.f32.xlu0 %v555
        %v557 = vpop.xlane.xlu0 %556
        %v558 = vsel %vm321, %v529, 0.0
        %559 = vadd.xlane.f32.xlu0 %v558
        %v560 = vpop.xlane.xlu0 %559
        %v561 = vsel %vm321, %v530, 0.0
        %562 = vadd.xlane.f32.xlu0 %v561
        %v563 = vpop.xlane.xlu0 %562
        %v564 = vadd.f32 %v548, %v554
        %v565 = vadd.f32 %v549, %v557
        %v566 = vadd.f32 %v550, %v560
        %v567 = vadd.f32 %v551, %v563
        %vm568 = vcmask 7168
        %569 = vst.msk [vmem:[#allocation2] sm:$0xff] %vm568, %v564
        %570 = vst.msk [vmem:[#allocation2 + $0x8] sm:$0xff] %vm568, %v565
        %571 = vst.msk [vmem:[#allocation2 + $0x10] sm:$0xff] %vm568, %v566
        %572 = vst.msk [vmem:[#allocation2 + $0x18] sm:$0xff] %vm568, %v567
        %v573 = vld [vmem:[#allocation3] sm:$0xff]
        %v574 = vld [vmem:[#allocation3 + $0x8] sm:$0xff]
        %v575 = vld [vmem:[#allocation3 + $0x10] sm:$0xff]
        %v576 = vld [vmem:[#allocation3 + $0x18] sm:$0xff]
        %v577 = vmul.f32 %v527, %v527
        %v578 = vmul.f32 %v528, %v528
        %v579 = vmul.f32 %v529, %v529
        %v580 = vmul.f32 %v530, %v530
        %v581 = vsel %vm321, %v577, 0.0
        %582 = vadd.xlane.f32.xlu0 %v581
        %v583 = vpop.xlane.xlu0 %582
        %v584 = vsel %vm321, %v578, 0.0
        %585 = vadd.xlane.f32.xlu0 %v584
        %v586 = vpop.xlane.xlu0 %585
        %v587 = vsel %vm321, %v579, 0.0
        %588 = vadd.xlane.f32.xlu0 %v587
        %v589 = vpop.xlane.xlu0 %588
        %v590 = vsel %vm321, %v580, 0.0
        %591 = vadd.xlane.f32.xlu0 %v590
        %v592 = vpop.xlane.xlu0 %591
        %v593 = vadd.f32 %v573, %v583
        %v594 = vadd.f32 %v574, %v586
        %v595 = vadd.f32 %v575, %v589
        %v596 = vadd.f32 %v576, %v592
        %597 = vst.msk [vmem:[#allocation3] sm:$0xff] %vm568, %v593
        %598 = vst.msk [vmem:[#allocation3 + $0x8] sm:$0xff] %vm568, %v594
        %599 = vst.msk [vmem:[#allocation3 + $0x10] sm:$0xff] %vm568, %v595
        %600 = vst.msk [vmem:[#allocation3 + $0x18] sm:$0xff] %vm568, %v596
      $region56: #{tpu_custom_call.1} parent=51 // pred_fallthru
        _
      %p601 = scmp.eq.s32.totalorder %s23, 1
      // Predicated region
      $region61: #{tpu_custom_call.1} parent=51 // pred_check
        %p602 = pneg %p601
      $region62: #{tpu_custom_call.1} parent=51 // pred_check_branch
        %604 = sbr.rel (%p602) target = $region64
      $region63: #{tpu_custom_call.1} parent=51 // pred_region
        %v605 = vld [vmem:[#allocation2] sm:$0xff]
        %v606 = vld [vmem:[#allocation2 + $0x8] sm:$0xff]
        %v607 = vld [vmem:[#allocation2 + $0x10] sm:$0xff]
        %v608 = vld [vmem:[#allocation2 + $0x18] sm:$0xff]
        %v609 = vmul.f32 %v605, 0.008333334
        %v610 = vmul.f32 %v606, 0.008333334
        %v611 = vmul.f32 %v607, 0.008333334
        %v612 = vmul.f32 %v608, 0.008333334
        %v613 = vld [vmem:[#allocation3] sm:$0xff]
        %v614 = vld [vmem:[#allocation3 + $0x8] sm:$0xff]
        %v615 = vld [vmem:[#allocation3 + $0x10] sm:$0xff]
        %v616 = vld [vmem:[#allocation3 + $0x18] sm:$0xff]
        %v617 = vmul.f32 %v613, 0.008333334
        %v618 = vmul.f32 %v614, 0.008333334
        %v619 = vmul.f32 %v615, 0.008333334
        %v620 = vmul.f32 %v616, 0.008333334
        %v621 = vmul.f32 %v609, %v609
        %v622 = vmul.f32 %v610, %v610
        %v623 = vmul.f32 %v611, %v611
        %v624 = vmul.f32 %v612, %v612
        %v625 = vsub.f32 %v617, %v621
        %v626 = vsub.f32 %v618, %v622
        %v627 = vsub.f32 %v619, %v623
        %v628 = vsub.f32 %v620, %v624
        %v629 = vld [vmem:[%s4] sm:$0xff]
        %v630 = vld [vmem:[%s4 + $0x8] sm:$0xff]
        %v631 = vld [vmem:[%s4 + $0x10] sm:$0xff]
        %v632 = vld [vmem:[%s4 + $0x18] sm:$0xff]
        %v633 = vadd.f32 %v625, 1e-05
        %v634 = vadd.f32 %v626, 1e-05
        %v635 = vadd.f32 %v627, 1e-05
        %v636 = vadd.f32 %v628, 1e-05
        %v637 = vrsqrt.pop %v633
        %v638 = vrsqrt.pop %v634
        %v639 = vrsqrt.pop %v635
        %v640 = vrsqrt.pop %v636
        %v641 = vmul.f32 %v629, %v637
        %v642 = vmul.f32 %v630, %v638
        %v643 = vmul.f32 %v631, %v639
        %v644 = vmul.f32 %v632, %v640
        %v645 = vld [vmem:[%s5] sm:$0xff]
        %v646 = vld [vmem:[%s5 + $0x8] sm:$0xff]
        %v647 = vld [vmem:[%s5 + $0x10] sm:$0xff]
        %v648 = vld [vmem:[%s5 + $0x18] sm:$0xff]
        %v649 = vmul.f32 %v609, %v641
        %v650 = vmul.f32 %v610, %v642
        %v651 = vmul.f32 %v611, %v643
        %v652 = vmul.f32 %v612, %v644
        %v653 = vsub.f32 %v645, %v649
        %v654 = vsub.f32 %v646, %v650
        %v655 = vsub.f32 %v647, %v651
        %v656 = vsub.f32 %v648, %v652
        %658 = vset.pattern.permute.xlu0 0
        %659 = vperm.xlu0 %658, %v641
        %v660 = vpop.permute.xlu0 %659
        %663 = vset.pattern.permute.xlu0 0
        %664 = vperm.xlu0 %663, %v642
        %v665 = vpop.permute.xlu0 %664
        %668 = vset.pattern.permute.xlu0 0
        %669 = vperm.xlu0 %668, %v643
        %v670 = vpop.permute.xlu0 %669
        %673 = vset.pattern.permute.xlu0 0
        %674 = vperm.xlu0 %673, %v644
        %v675 = vpop.permute.xlu0 %674
        %v677 = vmul.f32 %v527, %v660
        %v678 = vmul.f32 %v528, %v665
        %v679 = vmul.f32 %v529, %v670
        %v680 = vmul.f32 %v530, %v675
        %682 = vset.pattern.permute.xlu0 0
        %683 = vperm.xlu0 %682, %v653
        %v684 = vpop.permute.xlu0 %683
        %687 = vset.pattern.permute.xlu0 0
        %688 = vperm.xlu0 %687, %v654
        %v689 = vpop.permute.xlu0 %688
        %692 = vset.pattern.permute.xlu0 0
        %693 = vperm.xlu0 %692, %v655
        %v694 = vpop.permute.xlu0 %693
        %697 = vset.pattern.permute.xlu0 0
        %698 = vperm.xlu0 %697, %v656
        %v699 = vpop.permute.xlu0 %698
        %v701 = vadd.f32 %v677, %v684
        %v702 = vadd.f32 %v678, %v689
        %v703 = vadd.f32 %v679, %v694
        %v704 = vadd.f32 %v680, %v699
        %v705 = vtanh.pop %v701
        %v706 = vtanh.pop %v702
        %v707 = vtanh.pop %v703
        %v708 = vtanh.pop %v704
        %v709 = vld [vmem:[%s6] sm:$0xf]
        %v710 = vld [vmem:[%s6 + $0x4] sm:$0xf]
        %v711 = vpack.c.bf16 %v706, %v705
        %v712 = vpack.c.bf16 %v708, %v707
        %v713 = vld [vmem:[%s7] sm:$0xff]
        %v714 = vld [vmem:[%s7 + $0x8] sm:$0xff]
        %716 = vset.pattern.permute.xlu0 0
        %717 = vperm.xlu0 %716, %v713
        %v718 = vpop.permute.xlu0 %717
        %721 = vset.pattern.permute.xlu0 0
        %722 = vperm.xlu0 %721, %v714
        %v723 = vpop.permute.xlu0 %722
        %v727 = vunpack.c.l.b16 %v709
        %v728 = vunpack.c.l.b16 %v710
        %v729 = vpack.c.b16 %v728, %v727
        %v731 = vsel %vm385, %v729, 0
        %733 = vmatprep.subr.bf16.mxu0 0
        %734 = vmatpush1.bf16.msra.mxu0 %v711
        %735 = vmatprep.subr.bf16.mxu0 0
        %736 = vmatpush1.bf16.msra.mxu0 %v712
        %737 = vmatprep.subr.bf16.mxu0 0
        %738 = vmatpush1.bf16.msra.mxu0 0
        %739 = vmatprep.subr.bf16.mxu0 0
        %740 = vmatpush1.bf16.msra.mxu0 0
        %741 = vmatprep.subr.bf16.mxu0 0
        %742 = vmatpush1.bf16.msra.mxu0 0
        %743 = vmatprep.subr.bf16.mxu0 0
        %744 = vmatpush1.bf16.msra.mxu0 0
        %745 = vmatprep.subr.bf16.mxu0 0
        %746 = vmatpush1.bf16.msra.mxu0 0
        %747 = vmatprep.subr.bf16.mxu0 0
        %748 = vmatpush1.bf16.msra.mxu0 0
        %749 = vmatprep.subr.bf16.mxu0 0
        %750 = vmatpush1.bf16.msra.mxu0 0
        %751 = vmatprep.subr.bf16.mxu0 0
        %752 = vmatpush1.bf16.msra.mxu0 0
        %753 = vmatprep.subr.bf16.mxu0 0
        %754 = vmatpush1.bf16.msra.mxu0 0
        %755 = vmatprep.subr.bf16.mxu0 0
        %756 = vmatpush1.bf16.msra.mxu0 0
        %757 = vmatprep.subr.bf16.mxu0 0
        %758 = vmatpush1.bf16.msra.mxu0 0
        %759 = vmatprep.subr.bf16.mxu0 0
        %760 = vmatpush1.bf16.msra.mxu0 0
        %761 = vmatprep.subr.bf16.mxu0 0
        %762 = vmatpush1.bf16.msra.mxu0 0
        %763 = vmatprep.subr.bf16.mxu0 0
        %764 = vmatpush1.bf16.msra.mxu0 0
        %765 = vmatprep.mubr.bf16.mxu0 0
        %766 = vmatmul.mubr.bf16.gmra.mrb[0].mxu0 %v731
        %v767 = vpop.f32.mrb[0].mxu0
        %v768 = vadd.f32 %v718, %v767
        %v769 = vpop.f32.mrb[0].mxu0
        %v770 = vpop.f32.mrb[0].mxu0
        %v771 = vadd.f32 %v723, %v770
        %v772 = vpop.f32.mrb[0].mxu0
        %773 = vdwg.mxu0
        %v774 = vsel %vm321, %v768, -inf
        %775 = vmax.xlane.f32.xlu0 %v774
        %v776 = vpop.xlane.xlu0 %775
        %v777 = vsel %vm321, %v771, -inf
        %778 = vmax.xlane.f32.xlu0 %v777
        %v779 = vpop.xlane.xlu0 %778
        %v780 = vsub.f32 %v768, %v776
        %v781 = vsub.f32 %v771, %v779
        %v782 = vmul.f32 %v780, 1.442695
        %v783 = vpow.pop %v782
        %v784 = vmul.f32 %v781, 1.442695
        %v785 = vpow.pop %v784
        %v786 = vsel %vm321, %v783, 0.0
        %787 = vadd.xlane.f32.xlu0 %v786
        %v788 = vpop.xlane.xlu0 %787
        %v789 = vsel %vm321, %v785, 0.0
        %790 = vadd.xlane.f32.xlu0 %v789
        %v791 = vpop.xlane.xlu0 %790
        %v792 = vrcp.pop %v788
        %v793 = vrcp.pop %v791
        %v794 = vmul.f32 %v783, %v792
        %v795 = vmul.f32 %v785, %v793
        %v796 = vmul.f32 %v794, %v319
        %v797 = vmul.f32 %v795, %v320
        %v798 = vsel %vm321, %v796, 0.0
        %799 = vadd.xlane.f32.xlu0 %v798
        %v800 = vpop.xlane.xlu0 %799
        %v801 = vsel %vm321, %v797, 0.0
        %802 = vadd.xlane.f32.xlu0 %v801
        %v803 = vpop.xlane.xlu0 %802
        %v804 = vmul.f32 %v794, %v330
        %v805 = vmul.f32 %v795, %v331
        %v806 = vsel %vm321, %v804, 0.0
        %807 = vadd.xlane.f32.xlu0 %v806
        %v808 = vpop.xlane.xlu0 %807
        %v809 = vsel %vm321, %v805, 0.0
        %810 = vadd.xlane.f32.xlu0 %v809
        %v811 = vpop.xlane.xlu0 %810
        %v812 = vmul.f32 %v800, %v800
        %v813 = vmul.f32 %v803, %v803
        %v814 = vsub.f32 %v808, %v812
        %v815 = vsub.f32 %v811, %v813
        %v816 = vmax.f32 %v814, 1e-12
        %v817 = vmax.f32 %v815, 1e-12
        %v818 = vrsqrt.pop %v816
        %v819 = vmul.f32 %v816, %v818
        %vm820 = vcmp.eq.f32.partialorder %v816, inf
        %v821 = vsel %vm820, %v816, %v819
        %vm822 = vcmp.eq.f32.partialorder %v816, 0.0
        %v823 = vand.u32 %v816, 2147483648
        %v824 = vsel %vm822, %v823, %v821
        %v825 = vrsqrt.pop %v817
        %v826 = vmul.f32 %v817, %v825
        %vm827 = vcmp.eq.f32.partialorder %v817, inf
        %v828 = vsel %vm827, %v817, %v826
        %vm829 = vcmp.eq.f32.partialorder %v817, 0.0
        %v830 = vand.u32 %v817, 2147483648
        %v831 = vsel %vm829, %v830, %v828
        %vm832 = vcmask 7168
        %833 = vst.msk [vmem:[%s317] sm:$0xff] %vm832, %v800
        %834 = vst.msk [vmem:[%s317 + $0x8] sm:$0xff] %vm832, %v803
        %835 = vst.msk [vmem:[%s317 + $0x10] sm:$0xff] %vm832, %v824
        %836 = vst.msk [vmem:[%s317 + $0x18] sm:$0xff] %vm832, %v831
      $region64: #{tpu_custom_call.1} parent=51 // pred_fallthru
        _
      %p837 = scmp.lt.s32.totalorder %s24, 2
      %s838 = scalar_select %p837, %s24, 2
      %s839 = smul.addr %s838, 4
      %s840 = smul.addr %s839, 8
      %s841 = scalar_lea.vmem %s8, %s840
      // Predicated region
      $region65: #{tpu_custom_call.1} parent=51 // pred_check
        %p842 = pneg %p222
      $region66: #{tpu_custom_call.1} parent=51 // pred_check_branch
        %844 = sbr.rel (%p842) target = $region68
      $region67: #{tpu_custom_call.1} parent=51 // pred_region
        _
      $region68: #{tpu_custom_call.1} parent=51 // pred_fallthru
        _
    $region52: #{tpu_custom_call.1} parent=5 // pred_fallthru
      _
    %p845 = scmp.le.s32.totalorder 2, %s14
    // Predicated region
    $region69: #{tpu_custom_call.1} parent=5 // pred_check
      %p846 = pneg %p845
    $region70: #{tpu_custom_call.1} parent=5 // pred_check_branch
      %848 = sbr.rel (%p846) target = $region72
    $region71: #{tpu_custom_call.1} parent=5 // pred_region
      %s849 = ssub.s32 %s14, 2
      // Predicated region
      $region73: #{tpu_custom_call.1} parent=71 // pred_check
        %p850 = pneg %p228
      $region74: #{tpu_custom_call.1} parent=71 // pred_check_branch
        %852 = sbr.rel (%p850) target = $region76
      $region75: #{tpu_custom_call.1} parent=71 // pred_region
        %p853 = scmp.lt.s32.totalorder %s26, 2
        %s854 = scalar_select %p853, %s26, 2
        %s855 = smul.addr %s854, 4
        %s856 = smul.addr %s855, 8
        %s857 = scalar_lea.vmem %s8, %s856
      $region76: #{tpu_custom_call.1} parent=71 // pred_fallthru
        _
    $region72: #{tpu_custom_call.1} parent=5 // pred_fallthru
      _
  $region6: #{tpu_custom_call.1} parent=0 // loop_footer
    %s18 = sadd.s32 1, %s14
  $region7: #{tpu_custom_call.1} parent=0 // loop_footer_branch
    %13 = sbr.rel target = $region3
  $region8: #{tpu_custom_call.1} parent=0 // loop_exit
    _

</llo_original>
